<compile_context>
chip_gen: v5e
topology: v5e:2x2
jax: 0.10.0
libtpu: 0.0.40
codegen_flags: <defaults>
</compile_context>

<pallas_src>
import functools

import jax
import jax.numpy as jnp
from jax import lax
from jax.experimental import pallas as pl
from jax.experimental.pallas import tpu as pltpu

_SUBLANE = 8             # f32 vreg sublane count
_SINGLE_SHOT_MAX = 1024  # below this, skip the grid / pipeline machinery


def _round_up(n, m):
    return ((n + m - 1) // m) * m


def _lenet5u_kernel(x_ref, w_ref, b_ref, o_ref):
    """Fused ReLU -> matmul (MXU) -> bias add on VMEM-resident tiles.

    x_ref: (Bt, K) activations; w_ref: (N, K) weight in native PyTorch
    (out, in) layout (transpose folded into the contraction); b_ref: (1, N).
    """
    x = jnp.maximum(x_ref[...], 0.0)                     # ReLU (VPU, f32)
    acc = lax.dot_general(
        x, w_ref[...],
        dimension_numbers=(((1,), (1,)), ((), ())),      # x @ w.T without a transpose op
        preferred_element_type=jnp.float32,
    )
    o_ref[...] = (acc + b_ref[...]).astype(o_ref.dtype)


@functools.partial(jax.jit, static_argnames=("block_b",))
def lenet5u_forward(x, weight, bias, *, block_b=4096):
    """x: (B, 120); weight: (num_classes, 120) (PyTorch layout); bias: (num_classes,).

    Returns (B, num_classes) in x.dtype.
    """
    B, K = x.shape
    N = weight.shape[0]
    assert weight.shape == (N, K)
    assert bias.shape == (N,)
    b2 = bias.reshape(1, N)

    # Advisory: tiny, memory-bound op — let XLA schedule/overlap it.
    cost = pl.CostEstimate(
        flops=2 * B * K * N,
        transcendentals=0,
        bytes_accessed=(x.size * x.dtype.itemsize
                        + weight.size * weight.dtype.itemsize
                        + bias.size * bias.dtype.itemsize
                        + B * N * x.dtype.itemsize),
    )

    if B <= min(block_b, _SINGLE_SHOT_MAX):
        # Small batch: single shot, whole-array VMEM blocks, no pipeline
        # bookkeeping, no padding anywhere.
        return pl.pallas_call(
            _lenet5u_kernel,
            out_shape=jax.ShapeDtypeStruct((B, N), x.dtype),
            in_specs=[
                pl.BlockSpec(memory_space=pltpu.MemorySpace.VMEM),
                pl.BlockSpec(memory_space=pltpu.MemorySpace.VMEM),
                pl.BlockSpec(memory_space=pltpu.MemorySpace.VMEM),
            ],
            out_specs=pl.BlockSpec(memory_space=pltpu.MemorySpace.VMEM),
            cost_estimate=cost,
        )(x, weight, b2)

    # --- batch-tiled path: grid over batch, "parallel" for megacore ---------
    # Clamp the tile so there are always >= 2 tiles (v7x has 2 TensorCores).
    # Pallas handles the partial last tile, so x is never padded in HBM.
    bt = min(block_b, _round_up(pl.cdiv(B, 2), _SUBLANE))
    grid = (pl.cdiv(B, bt),)
    return pl.pallas_call(
        _lenet5u_kernel,
        out_shape=jax.ShapeDtypeStruct((B, N), x.dtype),
        grid=grid,
        in_specs=[
            pl.BlockSpec((bt, K), lambda i: (i, 0)),   # batch tile of x
            pl.BlockSpec((N, K), lambda i: (0, 0)),    # full weight, VMEM resident
            pl.BlockSpec((1, N), lambda i: (0, 0)),    # full bias
        ],
        out_specs=pl.BlockSpec((bt, N), lambda i: (i, 0)),
        compiler_params=pltpu.CompilerParams(
            dimension_semantics=("parallel",),
            # Headroom above v5e's 16 MiB default scoped limit so block_b can
            # be raised to 8192 if desired; safe on all generations.
            vmem_limit_bytes=32 * 1024 * 1024,
        ),
        cost_estimate=cost,
    )(x, weight, b2)


if __name__ == "__main__":
    key = jax.random.PRNGKey(0)
    kx, kw, kb = jax.random.split(key, 3)

    in_features = 120    # LeNet5U's full2 expects 120-dim features
    num_classes = 10

    # Deterministic synthetic parameters (PyTorch Linear layout: (out, in)).
    weight = jax.random.normal(kw, (num_classes, in_features), dtype=jnp.float32) * 0.05
    bias = jax.random.normal(kb, (num_classes,), dtype=jnp.float32) * 0.05

    def ref_fn(xx):
        return jnp.maximum(xx, 0.0) @ weight.T + bias

    # Small-batch (single-shot, no-grid) path.
    batch = 8
    x = jax.random.normal(kx, (batch, in_features), dtype=jnp.float32)
    out = jax.block_until_ready(lenet5u_forward(x, weight, bias))
    assert out.shape == (batch, num_classes)
    assert jnp.allclose(out, ref_fn(x), atol=1e-5, rtol=1e-5)

    # Batch-tiled (megacore-parallel) path, batch a multiple of the tile.
    xb = jax.random.normal(kx, (2048, in_features), dtype=jnp.float32)
    out_b = jax.block_until_ready(lenet5u_forward(xb, weight, bias))
    assert out_b.shape == (2048, num_classes)
    assert jnp.allclose(out_b, ref_fn(xb), atol=1e-4, rtol=1e-4)

    # Ragged batch: exercises Pallas partial-last-tile handling (no wrapper
    # padding of x, padded rows never contaminate valid rows).
    xr = jax.random.normal(kx, (2051, in_features), dtype=jnp.float32)
    out_r = jax.block_until_ready(lenet5u_forward(xr, weight, bias))
    assert out_r.shape == (2051, num_classes)
    assert jnp.allclose(out_r, ref_fn(xr), atol=1e-4, rtol=1e-4)

    print("KERNEL_OK")
</pallas_src>

<mosaic_0001>
module attributes {stable_mosaic.version = 11 : i64} {
  func.func @_lenet5u_kernel(%arg0: memref<8x120xf32, #tpu.memory_space<vmem>>, %arg1: memref<10x120xf32, #tpu.memory_space<vmem>>, %arg2: memref<1x10xf32, #tpu.memory_space<vmem>>, %arg3: memref<8x10xf32, #tpu.memory_space<vmem>>) attributes {dimension_semantics = [], scalar_prefetch = 0 : i64, scratch_operands = 0 : i64, tpu.core_type = #tpu.core_type<tc>} {
    %c0 = arith.constant 0 : index
    %c0_0 = arith.constant 0 : index
    %0 = vector.load %arg0[%c0, %c0_0] : memref<8x120xf32, #tpu.memory_space<vmem>>, vector<8x120xf32>
    %cst = arith.constant 0.000000e+00 : f32
    %1 = vector.broadcast %cst : f32 to vector<8x120xf32>
    %2 = arith.maximumf %0, %1 : vector<8x120xf32>
    %c0_1 = arith.constant 0 : index
    %c0_2 = arith.constant 0 : index
    %3 = vector.load %arg1[%c0_1, %c0_2] : memref<10x120xf32, #tpu.memory_space<vmem>>, vector<10x120xf32>
    %cst_3 = arith.constant dense<0.000000e+00> : vector<8x10xf32>
    %4 = tpu.matmul %2, %3, %cst_3 {dimension_numbers = #tpu.dot_dimension_numbers<[1], [1], [0], [0], [0, 0, 1, 0], [], []>} : vector<8x120xf32>, vector<10x120xf32>, vector<8x10xf32> -> vector<8x10xf32>
    %c0_4 = arith.constant 0 : index
    %c0_5 = arith.constant 0 : index
    %5 = vector.load %arg2[%c0_4, %c0_5] : memref<1x10xf32, #tpu.memory_space<vmem>>, vector<1x10xf32>
    %6 = vector.broadcast %5 : vector<1x10xf32> to vector<8x10xf32>
    %7 = arith.addf %4, %6 : vector<8x10xf32>
    %c0_6 = arith.constant 0 : index
    %c0_7 = arith.constant 0 : index
    %8 = vector.load %arg3[%c0_6, %c0_7] : memref<8x10xf32, #tpu.memory_space<vmem>>, vector<8x10xf32>
    tpu.vector_store %arg3[%c0_6, %c0_7], %7 {strides = array<i32>} : memref<8x10xf32, #tpu.memory_space<vmem>>, vector<8x10xf32>,
    return
  }
}

</mosaic_0001>

<llo_original>
// kernel: lenet5u_forward.1
$region0: #{lenet5u_forward.1}
  #allocation0 [shape = 'u32[]', space=smem, size = 0x4, offset = 0x4, fixed_abs, tag = 'smem constant byte address 0x4 - core index']
  #allocation1 [shape = 'u32[72,128]{1,0:T(1,128)}', space=vmem, size = 0x9000, scoped, tag = 'internal scratch']
  %s0 = inlined_call_operand.hbm [shape: f32[8,120], index: 0, kind: input, shape index: {}]
  %s1 = inlined_call_operand.hbm [shape: f32[10,120], index: 1, kind: input, shape index: {}]
  %s2 = inlined_call_operand.vmem [shape: f32[1,10], index: 2, kind: input, shape index: {}]
  %s3 = inlined_call_operand.hbm [shape: f32[8,10], index: 3, kind: output, shape index: {}]
  %s4 = sld [smem:[#allocation0]]
  $region30: #{lenet5u_forward.1} parent=0
    _
  %s6 = ssub.s32 1, %s4
  %s7 = scalar_select 0, %s6, %s4
  $region1: #{lenet5u_forward.1} parent=0
    #allocation2 [shape = 'u8[4096]{0}', space=vmem, size = 0x1000, scoped, tag = 'input window, operand 0, single buffered']
    #allocation3 [shape = 's32[1]{0}', space=sflag, size = 0x4, scoped, tag = 'scoped memory for lenet5u_forward.1']
    #allocation4 [shape = 's32[1]{0}', space=sflag, size = 0x4, scoped, tag = 'scoped memory for lenet5u_forward.1']
    #allocation5 [shape = 'u8[8192]{0}', space=vmem, size = 0x2000, scoped, tag = 'input window, operand 1, single buffered']
    #allocation6 [shape = 's32[1]{0}', space=sflag, size = 0x4, scoped, tag = 'scoped memory for lenet5u_forward.1']
    #allocation7 [shape = 'u8[4096]{0}', space=vmem, size = 0x1000, scoped, tag = 'output window, operand 0, single buffered']
    %8 = vsyncpa [#allocation3], 0
    %9 = vsyncpa [#allocation6], 0
    %10 = vsyncpa [#allocation4], 0
    // Predicated region
    $region2: #{lenet5u_forward.1} parent=1 // pred_check
      _
    $region3: #{lenet5u_forward.1} parent=1 // pred_check_branch
      %12 = sbr.rel (0) target = $region5
    $region4: #{lenet5u_forward.1} parent=1 // pred_region
      %14 = vsyncadd [#allocation3], 0
      %s16 = sshll.u32 %s0, 4
      %s17 = int_to_ptr.hbm [resolvable:$true] %s16
      %s18 = sshll.u32 [#allocation2], 4
      %s19 = int_to_ptr.vmem [resolvable:$true] %s18
      %21 = dma.hbm_to_vmem [thread:$0]  %s17, 128, %s19, [#allocation3]
    $region5: #{lenet5u_forward.1} parent=1 // pred_fallthru
      _
    // Predicated region
    $region6: #{lenet5u_forward.1} parent=1 // pred_check
      _
    $region7: #{lenet5u_forward.1} parent=1 // pred_check_branch
      %23 = sbr.rel (0) target = $region9
    $region8: #{lenet5u_forward.1} parent=1 // pred_region
      %25 = vsyncadd [#allocation6], 0
      %s26 = sshll.u32 %s1, 4
      %s27 = int_to_ptr.hbm [resolvable:$true] %s26
      %s28 = sshll.u32 [#allocation5], 4
      %s29 = int_to_ptr.vmem [resolvable:$true] %s28
      %34 = dma.hbm_to_vmem [thread:$0]  %s27, 256, %s29, [#allocation6], 128, 128, 8
    $region9: #{lenet5u_forward.1} parent=1 // pred_fallthru
      _
    // Predicated region
    $region10: #{lenet5u_forward.1} parent=1 // pred_check
      _
    $region11: #{lenet5u_forward.1} parent=1 // pred_check_branch
      %36 = sbr.rel (0) target = $region13
    $region12: #{lenet5u_forward.1} parent=1 // pred_region
      _
    $region13: #{lenet5u_forward.1} parent=1 // pred_fallthru
      _
    // Predicated region
    $region14: #{lenet5u_forward.1} parent=1 // pred_check
      _
    $region15: #{lenet5u_forward.1} parent=1 // pred_check_branch
      %38 = sbr.rel (0) target = $region17
    $region16: #{lenet5u_forward.1} parent=1 // pred_region
      %40 = dma.done [#allocation3], 128
    $region17: #{lenet5u_forward.1} parent=1 // pred_fallthru
      _
    // Predicated region
    $region18: #{lenet5u_forward.1} parent=1 // pred_check
      _
    $region19: #{lenet5u_forward.1} parent=1 // pred_check_branch
      %42 = sbr.rel (0) target = $region21
    $region20: #{lenet5u_forward.1} parent=1 // pred_region
      %44 = dma.done [#allocation6], 256
    $region21: #{lenet5u_forward.1} parent=1 // pred_fallthru
      _
    %v45 = vld [vmem:[#allocation2] sm:$0xff]
    %v46 = vmax.f32 %v45, 0.0
    %v47 = vld [vmem:[#allocation5] sm:$0xff]
    %v48 = vld [vmem:[#allocation5 + $0x8] sm:$0x3]
    %v49 = vld [vmem:[%s2] sm:$0x1]
    %v51 = vperm.slane %v49, 0
    %vm53 = vcmask 982016
    %v55 = vsel %vm53, %v46, 0
    %v58 = vsel %vm53, %v47, 0
    %v61 = vsel %vm53, %v48, 0
    %63 = vmatpush.xpose.msra.mxu0 0.0
    %64 = vmatpush.xpose.msra.mxu0 0.0
    %65 = vmatpush.xpose.msra.mxu0 0.0
    %66 = vmatpush.xpose.msra.mxu0 0.0
    %67 = vmatpush.xpose.msra.mxu0 0.0
    %68 = vmatpush.xpose.msra.mxu0 0.0
    %69 = vmatpush.xpose.msra.mxu0 0.0
    %70 = vmatpush.xpose.msra.mxu0 0.0
    %71 = vmatpush.xpose.msra.mxu0 0.0
    %72 = vmatpush.xpose.msra.mxu0 0.0
    %73 = vmatpush.xpose.msra.mxu0 0.0
    %74 = vmatpush.xpose.msra.mxu0 0.0
    %75 = vmatpush.xpose.msra.mxu0 0.0
    %76 = vmatpush.xpose.msra.mxu0 0.0
    %77 = vmatpush.xpose.msra.mxu0 %v61
    %78 = vmatpush.xpose.msra.mxu0 %v58
    %79 = vmatmul.f32.gmra.mxu0 %v55
    %v80 = vpop.f32.mrf.mxu0
    %v81 = vadd.f32 %v51, %v80
    %82 = vdwg.mxu0
    %vm83 = vcmask 80896
    %84 = vst.msk [vmem:[#allocation7] sm:$0xff] %vm83, %v81
    // Predicated region
    $region22: #{lenet5u_forward.1} parent=1 // pred_check
      _
    $region23: #{lenet5u_forward.1} parent=1 // pred_check_branch
      %86 = sbr.rel (0) target = $region25
    $region24: #{lenet5u_forward.1} parent=1 // pred_region
      %88 = vsyncadd [#allocation4], 0
      %s90 = sshll.u32 [#allocation7], 4
      %s91 = int_to_ptr.vmem [resolvable:$true] %s90
      %s92 = sshll.u32 %s3, 4
      %s93 = int_to_ptr.hbm [resolvable:$true] %s92
      %95 = dma.vmem_to_hbm [thread:$0]  %s91, 128, %s93, [#allocation4]
    $region25: #{lenet5u_forward.1} parent=1 // pred_fallthru
      _
    // Predicated region
    $region26: #{lenet5u_forward.1} parent=1 // pred_check
      _
    $region27: #{lenet5u_forward.1} parent=1 // pred_check_branch
      %97 = sbr.rel (0) target = $region29
    $region28: #{lenet5u_forward.1} parent=1 // pred_region
      %99 = dma.done [#allocation4], 128
    $region29: #{lenet5u_forward.1} parent=1 // pred_fallthru
      _
    %100 = vsyncpa [#allocation3], 1
    %101 = vsyncpa [#allocation6], 1
    %102 = vsyncpa [#allocation4], 1

</llo_original>
